<compile_context>
chip_gen: v6e
topology: v6e:2x2x1
jax: 0.10.0
libtpu: 0.0.40
codegen_flags: <defaults>
</compile_context>

<pallas_src>
import functools
import math

import jax
import jax.numpy as jnp
from jax import lax
from jax.experimental import pallas as pl
from jax.experimental.pallas import tpu as pltpu

_MASK_VALUE = -100000000.0


def _round_up(x, m):
    return ((x + m - 1) // m) * m


def _attention_kernel(qm_ref, h_ref, bias_ref, out_ref, *scratch, tanh_clipping):
    # qm_ref:   (Bt, Nqp, D)   pre-projected queries  q @ (norm * Wq Wk^T)
    # h_ref:    (Bt, Gh,  D)   keys/data, graph dim padded only to mult. of 8
    # bias_ref: (Bt, 1,  Gp)   0.0 = keep, -1e8 = masked / padded column
    # out_ref:  (Bt, Nqp, Gp)  log-softmax attention (lane-dense, Gp % 128 == 0)
    # scratch:  one (Bt, Nqp, Gp) f32 VMEM buffer, present iff Gh < Gp
    bt, nq, _ = qm_ref.shape
    gh = h_ref.shape[1]
    gp = bias_ref.shape[2]

    # Batched scores; contraction over the last dim of both operands (no
    # explicit transpose of h).  MXU work is tiny and hidden behind HBM DMA.
    u = lax.dot_general(
        qm_ref[...], h_ref[...],
        dimension_numbers=(((2,), (2,)), ((0,), (0,))),
        preferred_element_type=jnp.float32)                    # (Bt, Nqp, Gh)

    u = tanh_clipping * jnp.tanh(u)                            # f32 EUP path

    if scratch:
        # Widen scores to the lane-dense Gp width via static-slice stores;
        # pad columns carry the mask value so the softmax denom is unchanged.
        u_full = scratch[0]
        u_full[...] = jnp.full((bt, nq, gp), _MASK_VALUE, jnp.float32)
        u_full[:, :, :gh] = u
        u = u_full[...]

    # Exact reference semantics: masked / padded positions are replaced.
    bias_b = jnp.broadcast_to(bias_ref[...], u.shape)
    u = jnp.where(bias_b < -1.0, jnp.float32(_MASK_VALUE), u)

    # log_softmax along the last (lane) axis, in f32.
    u_max = jnp.max(u, axis=-1, keepdims=True)
    shifted = u - u_max
    lse = jnp.log(jnp.sum(jnp.exp(shifted), axis=-1, keepdims=True))
    out_ref[...] = (shifted - lse).astype(out_ref.dtype)


def _pad_cast(x, shape, dtype):
    """Zero-pad to `shape` and cast; skip the staging copy when aligned."""
    if tuple(x.shape) == tuple(shape):
        return x if x.dtype == dtype else x.astype(dtype)
    buf = jnp.zeros(shape, dtype)
    return buf.at[tuple(slice(0, s) for s in x.shape)].set(x.astype(dtype))


def _vmem_limit_bytes():
    # v5e / v6e: 128 MiB physical -> 64 MiB scoped; v7x: 64 MiB -> 32 MiB.
    try:
        cap = int(pltpu.get_tpu_info().vmem_capacity_bytes)
    except Exception:
        cap = 64 * 1024 * 1024          # conservative fallback (v7x-sized)
    return min(64 * 1024 * 1024, cap // 2)


def single_head_attention(q, h, w_query, w_key, mask=None, *, tanh_clipping,
                          matmul_dtype=jnp.bfloat16, out_dtype=jnp.float32):
    """q: (B, Nq, D), h: (B, G, D) or None, w_*: (D, D), mask: (B, G)/(B,1,G).

    matmul_dtype: dtype of the score-matmul operands (bf16 default halves the
        dominant h HBM stream; accumulation is always f32).
    out_dtype: dtype of the returned log-probs (bf16 halves write-back).
    """
    if h is None:
        h = q
    B, Nq, D = q.shape
    G = h.shape[1]
    norm_factor = 1.0 / math.sqrt(D)

    # Fold the projections and hoist them out of the kernel:
    #   (q Wq)(h Wk)^T == (q (norm * Wq Wk^T)) h^T   -- one XLA matmul in f32.
    M = norm_factor * jnp.dot(w_query.astype(jnp.float32),
                              w_key.astype(jnp.float32).T)
    qm = jnp.einsum("bqd,de->bqe", q.astype(jnp.float32), M)

    # Padding: only the bias / output lane dim needs 128; h's graph dim is a
    # sublane dim of its block and only needs 8 (keeps the h read stream lean).
    Nqp = _round_up(Nq, 8)
    Gh = _round_up(G, 8)
    Gp = _round_up(G, 128)

    # Generation-aware batch tiling.
    vmem_limit = _vmem_limit_bytes()
    mm_size = jnp.dtype(matmul_dtype).itemsize
    o_size = jnp.dtype(out_dtype).itemsize
    # Live bytes per batch element: double-buffered in/out tiles plus the f32
    # intermediates (scores, shifted, exp, widening scratch).
    per_b = (2 * (Nqp * D * mm_size + Gh * D * mm_size + Gp * 4
                  + Nqp * Gp * o_size)
             + 4 * Nqp * Gp * 4)
    budget = (6 * vmem_limit) // 10
    bt = max(1, min(B, budget // max(per_b, 1)))
    # Keep >= ~8 grid steps when B allows (>= 4 per v7x TensorCore) so the
    # BlockSpec pipeline actually overlaps HBM DMA with compute.
    bt = min(bt, max(1, pl.cdiv(B, 8)))
    Bp = _round_up(B, bt)
    grid = Bp // bt
    # TODO(synk): for very large graphs (Gh*D tile alone nearing the per-step
    # VMEM budget at bt=1, roughly G >~ 16-32K on v7x), add a second grid axis
    # over G-blocks with an online log-sum-exp instead of one resident G tile.

    # Mask -> replacement bias (0.0 keep, -1e8 replace).  Padded graph columns
    # and padded batch rows are marked "replace"; they are sliced off anyway.
    if mask is not None:
        real = jnp.where(mask.reshape(B, 1, G).astype(jnp.float32) > 0,
                         jnp.float32(_MASK_VALUE), jnp.float32(0.0))
    else:
        real = jnp.zeros((B, 1, G), dtype=jnp.float32)
    if (B, 1, G) == (Bp, 1, Gp):
        bias = real
    else:
        bias = jnp.full((Bp, 1, Gp), _MASK_VALUE, dtype=jnp.float32)
        bias = bias.at[:B, :, :G].set(real)

    qmp = _pad_cast(qm, (Bp, Nqp, D), matmul_dtype)
    hp = _pad_cast(h, (Bp, Gh, D), matmul_dtype)

    scratch_shapes = []
    if Gh < Gp:
        scratch_shapes.append(pltpu.VMEM((bt, Nqp, Gp), jnp.float32))

    kernel = functools.partial(_attention_kernel,
                               tanh_clipping=float(tanh_clipping))

    out = pl.pallas_call(
        kernel,
        out_shape=jax.ShapeDtypeStruct((Bp, Nqp, Gp), out_dtype),
        grid_spec=pltpu.PrefetchScalarGridSpec(
            num_scalar_prefetch=0,
            grid=(grid,),
            in_specs=[
                pl.BlockSpec((bt, Nqp, D), lambda b: (b, 0, 0)),   # qm
                pl.BlockSpec((bt, Gh, D), lambda b: (b, 0, 0)),    # h
                pl.BlockSpec((bt, 1, Gp), lambda b: (b, 0, 0)),    # mask bias
            ],
            out_specs=pl.BlockSpec((bt, Nqp, Gp), lambda b: (b, 0, 0)),
            scratch_shapes=scratch_shapes,
        ),
        compiler_params=pltpu.CompilerParams(
            dimension_semantics=("parallel",),
            vmem_limit_bytes=vmem_limit,
        ),
    )(qmp, hp, bias)

    return out[:B, :Nq, :G]


def _reference(q, h, w_query, w_key, mask, tanh_clipping):
    # Unfolded original formulation (matches the PyTorch module, f32).
    B, Nq, D = q.shape
    G = h.shape[1]
    norm_factor = 1.0 / math.sqrt(D)
    Q = jnp.einsum("bqd,de->bqe", q, w_query)
    K = jnp.einsum("bgd,de->bge", h, w_key)
    U = norm_factor * jnp.einsum("bqe,bge->bqg", Q, K)
    U = tanh_clipping * jnp.tanh(U)
    if mask is not None:
        m = jnp.broadcast_to(mask.reshape(B, 1, G).astype(bool), U.shape)
        U = jnp.where(m, _MASK_VALUE, U)
    return jax.nn.log_softmax(U, axis=-1)


def _reference_folded(q, h, w_query, w_key, mask, tanh_clipping, matmul_dtype):
    # Mirrors the kernel's math (folded projection in f32, score matmul with
    # matmul_dtype operands and f32 accumulation) to validate the bf16 path.
    B, Nq, D = q.shape
    G = h.shape[1]
    M = (1.0 / math.sqrt(D)) * jnp.dot(w_query, w_key.T)
    qm = jnp.einsum("bqd,de->bqe", q, M).astype(matmul_dtype)
    U = jnp.einsum("bqe,bge->bqg", qm, h.astype(matmul_dtype),
                   preferred_element_type=jnp.float32)
    U = tanh_clipping * jnp.tanh(U)
    if mask is not None:
        m = jnp.broadcast_to(mask.reshape(B, 1, G).astype(bool), U.shape)
        U = jnp.where(m, _MASK_VALUE, U)
    return jax.nn.log_softmax(U, axis=-1)


if __name__ == "__main__":
    embedding_dim = 32
    tanh_clipping = 10.0
    batch, n_query, graph_size = 2, 8, 8

    key = jax.random.PRNGKey(0)
    k_q, k_h, k_wq, k_wk, k_m = jax.random.split(key, 5)

    # nn.Parameter uniform(-stdv, stdv), stdv = 1/sqrt(embedding_dim).
    stdv = 1.0 / math.sqrt(embedding_dim)
    w_query = jax.random.uniform(k_wq, (embedding_dim, embedding_dim),
                                 jnp.float32, -stdv, stdv)
    w_key = jax.random.uniform(k_wk, (embedding_dim, embedding_dim),
                               jnp.float32, -stdv, stdv)

    q = jax.random.normal(k_q, (batch, n_query, embedding_dim), jnp.float32)
    h = jax.random.normal(k_h, (batch, graph_size, embedding_dim), jnp.float32)
    # mask: 1 where attention is NOT possible; keep column 0 always allowed.
    mask = (jax.random.uniform(k_m, (batch, graph_size)) > 0.7).astype(jnp.float32)
    mask = mask.at[:, 0].set(0.0)

    # f32 score path: tight check against the module semantics.
    out_f32 = single_head_attention(q, h, w_query, w_key, mask,
                                    tanh_clipping=tanh_clipping,
                                    matmul_dtype=jnp.float32)
    # Default fast path: bf16 score matmul; checked against a bf16 reference.
    out_bf16 = single_head_attention(q, h, w_query, w_key, mask,
                                     tanh_clipping=tanh_clipping)
    out_f32 = jax.block_until_ready(out_f32)
    out_bf16 = jax.block_until_ready(out_bf16)

    ref = _reference(q, h, w_query, w_key, mask, tanh_clipping)
    ref_bf16 = _reference_folded(q, h, w_query, w_key, mask, tanh_clipping,
                                 jnp.bfloat16)

    assert out_f32.shape == (batch, n_query, graph_size)
    assert out_bf16.shape == (batch, n_query, graph_size)
    # Folded Wq@Wk^T only changes f32 associativity; comfortably within 1e-4.
    assert jnp.allclose(out_f32, ref, atol=1e-4, rtol=1e-4), \
        "f32 kernel mismatch vs reference"
    assert jnp.allclose(out_bf16, ref_bf16, atol=5e-3, rtol=5e-3), \
        "bf16 kernel mismatch vs bf16 reference"

    print("KERNEL_OK")
</pallas_src>

<mosaic_0001>
module attributes {stable_mosaic.version = 11 : i64} {
  func.func @_attention_kernel(%arg0: i32, %arg1: memref<1x8x32xf32, #tpu.memory_space<vmem>>, %arg2: memref<1x8x32xf32, #tpu.memory_space<vmem>>, %arg3: memref<1x1x128xf32, #tpu.memory_space<vmem>>, %arg4: memref<1x8x128xf32, #tpu.memory_space<vmem>>, %arg5: memref<1x8x128xf32, #tpu.memory_space<vmem>>) attributes {dimension_semantics = [#tpu.dimension_semantics<parallel>], iteration_bounds = array<i64: 2>, scalar_prefetch = 0 : i64, scratch_operands = 1 : i64, tpu.core_type = #tpu.core_type<tc>, window_params = [{transform_indices = @transform_0, window_bounds = array<i64: 1, 8, 32>}, {transform_indices = @transform_1, window_bounds = array<i64: 1, 8, 32>}, {transform_indices = @transform_2, window_bounds = array<i64: 1, 1, 128>}, {transform_indices = @transform_3, window_bounds = array<i64: 1, 8, 128>}]} {
    %c0 = arith.constant 0 : index
    %c0_0 = arith.constant 0 : index
    %c0_1 = arith.constant 0 : index
    %0 = vector.load %arg1[%c0, %c0_0, %c0_1] : memref<1x8x32xf32, #tpu.memory_space<vmem>>, vector<1x8x32xf32>
    %c0_2 = arith.constant 0 : index
    %c0_3 = arith.constant 0 : index
    %c0_4 = arith.constant 0 : index
    %1 = vector.load %arg2[%c0_2, %c0_3, %c0_4] : memref<1x8x32xf32, #tpu.memory_space<vmem>>, vector<1x8x32xf32>
    %cst = arith.constant dense<0.000000e+00> : vector<1x8x8xf32>
    %2 = tpu.matmul %0, %1, %cst {dimension_numbers = #tpu.dot_dimension_numbers<[2], [2], [1], [1], [0, 0, 0, 1, 1, 1], [0], [0]>} : vector<1x8x32xf32>, vector<1x8x32xf32>, vector<1x8x8xf32> -> vector<1x8x8xf32>
    %3 = math.tanh %2 : vector<1x8x8xf32>
    %cst_5 = arith.constant 1.000000e+01 : f32
    %4 = vector.broadcast %cst_5 : f32 to vector<1x8x8xf32>
    %5 = arith.mulf %4, %3 : vector<1x8x8xf32>
    %cst_6 = arith.constant -1.000000e+08 : f32
    %6 = vector.broadcast %cst_6 : f32 to vector<1x8x128xf32>
    %c0_7 = arith.constant 0 : index
    %c0_8 = arith.constant 0 : index
    %c0_9 = arith.constant 0 : index
    %7 = vector.load %arg5[%c0_7, %c0_8, %c0_9] : memref<1x8x128xf32, #tpu.memory_space<vmem>>, vector<1x8x128xf32>
    tpu.vector_store %arg5[%c0_7, %c0_8, %c0_9], %6 {strides = array<i32>} : memref<1x8x128xf32, #tpu.memory_space<vmem>>, vector<1x8x128xf32>,
    %c0_10 = arith.constant 0 : index
    %c0_11 = arith.constant 0 : index
    %c0_12 = arith.constant 0 : index
    %8 = vector.load %arg5[%c0_10, %c0_11, %c0_12] : memref<1x8x128xf32, #tpu.memory_space<vmem>>, vector<1x8x8xf32>
    tpu.vector_store %arg5[%c0_10, %c0_11, %c0_12], %5 {strides = array<i32>} : memref<1x8x128xf32, #tpu.memory_space<vmem>>, vector<1x8x8xf32>,
    %c0_13 = arith.constant 0 : index
    %c0_14 = arith.constant 0 : index
    %c0_15 = arith.constant 0 : index
    %9 = vector.load %arg5[%c0_13, %c0_14, %c0_15] : memref<1x8x128xf32, #tpu.memory_space<vmem>>, vector<1x8x128xf32>
    %c0_16 = arith.constant 0 : index
    %c0_17 = arith.constant 0 : index
    %c0_18 = arith.constant 0 : index
    %10 = vector.load %arg3[%c0_16, %c0_17, %c0_18] : memref<1x1x128xf32, #tpu.memory_space<vmem>>, vector<1x1x128xf32>
    %11 = vector.shape_cast %10 : vector<1x1x128xf32> to vector<1x1x128xf32>
    %12 = vector.broadcast %11 : vector<1x1x128xf32> to vector<1x8x128xf32>
    %cst_19 = arith.constant -1.000000e+00 : f32
    %13 = vector.broadcast %cst_19 : f32 to vector<1x8x128xf32>
    %14 = arith.cmpf olt, %12, %13 : vector<1x8x128xf32>
    %cst_20 = arith.constant -1.000000e+08 : f32
    %15 = vector.broadcast %cst_20 : f32 to vector<1x8x128xf32>
    %16 = arith.select %14, %15, %9 : vector<1x8x128xi1>, vector<1x8x128xf32>
    %cst_21 = arith.constant dense<0xFF800000> : vector<1x8xf32>
    %17 = vector.multi_reduction <maximumf>, %16, %cst_21 [2] : vector<1x8x128xf32> to vector<1x8xf32>
    %18 = vector.shape_cast %17 : vector<1x8xf32> to vector<1x8x1xf32>
    %19 = vector.broadcast %18 : vector<1x8x1xf32> to vector<1x8x128xf32>
    %20 = arith.subf %16, %19 : vector<1x8x128xf32>
    %21 = math.exp %20 : vector<1x8x128xf32>
    %cst_22 = arith.constant dense<0.000000e+00> : vector<1x8xf32>
    %22 = vector.multi_reduction <add>, %21, %cst_22 [2] : vector<1x8x128xf32> to vector<1x8xf32>
    %23 = vector.shape_cast %22 : vector<1x8xf32> to vector<1x8x1xf32>
    %24 = math.log %23 : vector<1x8x1xf32>
    %25 = vector.broadcast %24 : vector<1x8x1xf32> to vector<1x8x128xf32>
    %26 = arith.subf %20, %25 : vector<1x8x128xf32>
    %c0_23 = arith.constant 0 : index
    %c0_24 = arith.constant 0 : index
    %c0_25 = arith.constant 0 : index
    %27 = vector.load %arg4[%c0_23, %c0_24, %c0_25] : memref<1x8x128xf32, #tpu.memory_space<vmem>>, vector<1x8x128xf32>
    tpu.vector_store %arg4[%c0_23, %c0_24, %c0_25], %26 {strides = array<i32>} : memref<1x8x128xf32, #tpu.memory_space<vmem>>, vector<1x8x128xf32>,
    return
  }
  func.func @transform_0(%arg0: i32) -> (i32, i32, i32) {
    %c0_i32 = arith.constant 0 : i32
    %c0_i32_0 = arith.constant 0 : i32
    %c0_i32_1 = arith.constant 0 : i32
    return %arg0, %c0_i32, %c0_i32_0 : i32, i32, i32
  }
  func.func @transform_1(%arg0: i32) -> (i32, i32, i32) {
    %c0_i32 = arith.constant 0 : i32
    %c0_i32_0 = arith.constant 0 : i32
    %c0_i32_1 = arith.constant 0 : i32
    return %arg0, %c0_i32, %c0_i32_0 : i32, i32, i32
  }
  func.func @transform_2(%arg0: i32) -> (i32, i32, i32) {
    %c0_i32 = arith.constant 0 : i32
    %c0_i32_0 = arith.constant 0 : i32
    %c0_i32_1 = arith.constant 0 : i32
    return %arg0, %c0_i32, %c0_i32_0 : i32, i32, i32
  }
  func.func @transform_3(%arg0: i32) -> (i32, i32, i32) {
    %c0_i32 = arith.constant 0 : i32
    %c0_i32_0 = arith.constant 0 : i32
    %c0_i32_1 = arith.constant 0 : i32
    return %arg0, %c0_i32, %c0_i32_0 : i32, i32, i32
  }
}

</mosaic_0001>

<llo_original>
// kernel: tpu_custom_call.1
$region0: #{tpu_custom_call.1}
  #allocation0 [shape = 'u32[]', space=smem, size = 0x4, offset = 0x4, fixed_abs, tag = 'smem constant byte address 0x4 - core index']
  #allocation1 [shape = 'u32[144,128]{1,0:T(1,128)}', space=vmem, size = 0x12000, scoped, tag = 'internal scratch']
  #allocation2 [shape = 'f32[1,8,128]{2,1,0:T(8,128)}', space=vmem, size = 0x1000, scoped, tag = 'scratch operand']
  %s0 = inlined_call_operand.hbm [shape: f32[2,8,32], index: 0, kind: input, shape index: {}]
  %s1 = inlined_call_operand.hbm [shape: f32[2,8,32], index: 1, kind: input, shape index: {}]
  %s2 = inlined_call_operand.vmem [shape: f32[2,1,128], index: 2, kind: input, shape index: {}]
  %s3 = inlined_call_operand.hbm [shape: f32[2,8,128], index: 3, kind: output, shape index: {}]
  %s4 = sld [smem:[#allocation0]]
  $region53: #{tpu_custom_call.1} parent=0
    _
  %s6 = ssub.s32 1, %s4
  %s7 = scalar_select 0, %s6, %s4
  $region1: #{tpu_custom_call.1} parent=0
    #allocation3 [shape = 'u8[8192]{0}', space=vmem, size = 0x2000, scoped, tag = 'input window, operand 0']
    #allocation4 [shape = 's32[2]{0}', space=sflag, size = 0x8, scoped, tag = 'scoped memory for tpu_custom_call.1']
    #allocation5 [shape = 's32[2]{0}', space=sflag, size = 0x8, scoped, tag = 'scoped memory for tpu_custom_call.1']
    #allocation6 [shape = 'u8[8192]{0}', space=vmem, size = 0x2000, scoped, tag = 'input window, operand 1']
    #allocation7 [shape = 's32[2]{0}', space=sflag, size = 0x8, scoped, tag = 'scoped memory for tpu_custom_call.1']
    #allocation8 [shape = 'u8[8192]{0}', space=vmem, size = 0x2000, scoped, tag = 'output window, operand 0']
    %8 = vsyncpa [#allocation4], 0
    %s9 = scalar_lea.sflag [#allocation4], 1
    %10 = vsyncpa %s9, 0
    %11 = vsyncpa [#allocation7], 0
    %s12 = scalar_lea.sflag [#allocation7], 1
    %13 = vsyncpa %s12, 0
    %14 = vsyncpa [#allocation5], 0
    %s15 = scalar_lea.sflag [#allocation5], 1
    %16 = vsyncpa %s15, 0
    loop: start=0, step=1, limit=4
    $region2: #{tpu_custom_call.1} parent=1 // loop_pre_header
      _
    $region3: #{tpu_custom_call.1} parent=1 // loop_header
      %s18 = sphi 0, %s22
      %p19 = scmp.ge.s32.totalorder %s18, 4
      %s28 = sphi 0, %s30
      %s31 = sphi 0, %s28
      %s32 = sphi 0, %s31
      %s48 = sphi 0, %s32
      %s54 = sphi 0, %s56
      %s57 = sphi 0, %s54
      %s58 = sphi 0, %s57
      %s74 = sphi 0, %s58
      %s80 = sphi 0, %s82
      %s83 = sphi 0, %s80
      %s84 = sphi 0, %s83
      %s100 = sphi 0, %s84
      %s106 = sphi 0, %s108
      %s109 = sphi 0, %s106
      %s110 = sphi 0, %s109
      %s126 = sphi 0, %s110
    $region4: #{tpu_custom_call.1} parent=1 // loop_header_branch
      %21 = sbr.rel (%p19) target = $region8
    $region5: #{tpu_custom_call.1} parent=1 // loop_body
      %s23 = ssub.s32 %s18, 1
      %s24 = ssub.s32 %s18, 2
      %s25 = sadd.s32 %s18, 1
      %s26 = ssub.s32 %s18, %s25
      %p27 = scmp.eq.s32.totalorder %s26, 0
      %s29 = sadd.s32 %s28, 1
      %s30 = scalar_select %p27, %s28, %s29
      %p33 = pneg %p27
      %p34 = scmp.eq.s32.totalorder %s18, 1
      %p35 = por %p33, %p34
      %p36 = scmp.ne.s32.totalorder %s28, %s31
      %p37 = scmp.eq.s32.totalorder %s18, 0
      %p38 = por %p36, %p37
      %p39 = scmp.ne.s32.totalorder %s28, %s31
      %p40 = scmp.eq.s32.totalorder %s23, 1
      %p41 = por %p39, %p40
      %p42 = scmp.ne.s32.totalorder %s31, %s32
      %p43 = scmp.eq.s32.totalorder %s23, 0
      %p44 = por %p42, %p43
      %p45 = scmp.ne.s32.totalorder %s31, %s32
      %p46 = scmp.eq.s32.totalorder %s24, 1
      %p47 = por %p45, %p46
      %p49 = scmp.ne.s32.totalorder %s32, %s48
      %p50 = scmp.eq.s32.totalorder %s24, 0
      %p51 = por %p49, %p50
      %s52 = ssub.s32 %s18, %s25
      %p53 = scmp.eq.s32.totalorder %s52, 0
      %s55 = sadd.s32 %s54, 1
      %s56 = scalar_select %p53, %s54, %s55
      %p59 = pneg %p53
      %p60 = scmp.eq.s32.totalorder %s18, 1
      %p61 = por %p59, %p60
      %p62 = scmp.ne.s32.totalorder %s54, %s57
      %p63 = scmp.eq.s32.totalorder %s18, 0
      %p64 = por %p62, %p63
      %p65 = scmp.ne.s32.totalorder %s54, %s57
      %p66 = scmp.eq.s32.totalorder %s23, 1
      %p67 = por %p65, %p66
      %p68 = scmp.ne.s32.totalorder %s57, %s58
      %p69 = scmp.eq.s32.totalorder %s23, 0
      %p70 = por %p68, %p69
      %p71 = scmp.ne.s32.totalorder %s57, %s58
      %p72 = scmp.eq.s32.totalorder %s24, 1
      %p73 = por %p71, %p72
      %p75 = scmp.ne.s32.totalorder %s58, %s74
      %p76 = scmp.eq.s32.totalorder %s24, 0
      %p77 = por %p75, %p76
      %s78 = ssub.s32 %s18, %s25
      %p79 = scmp.eq.s32.totalorder %s78, 0
      %s81 = sadd.s32 %s80, 1
      %s82 = scalar_select %p79, %s80, %s81
      %p85 = pneg %p79
      %p86 = scmp.eq.s32.totalorder %s18, 1
      %p87 = por %p85, %p86
      %p88 = scmp.ne.s32.totalorder %s80, %s83
      %p89 = scmp.eq.s32.totalorder %s18, 0
      %p90 = por %p88, %p89
      %p91 = scmp.ne.s32.totalorder %s80, %s83
      %p92 = scmp.eq.s32.totalorder %s23, 1
      %p93 = por %p91, %p92
      %p94 = scmp.ne.s32.totalorder %s83, %s84
      %p95 = scmp.eq.s32.totalorder %s23, 0
      %p96 = por %p94, %p95
      %p97 = scmp.ne.s32.totalorder %s83, %s84
      %p98 = scmp.eq.s32.totalorder %s24, 1
      %p99 = por %p97, %p98
      %p101 = scmp.ne.s32.totalorder %s84, %s100
      %p102 = scmp.eq.s32.totalorder %s24, 0
      %p103 = por %p101, %p102
      %s104 = ssub.s32 %s18, %s25
      %p105 = scmp.eq.s32.totalorder %s104, 0
      %s107 = sadd.s32 %s106, 1
      %s108 = scalar_select %p105, %s106, %s107
      %p111 = pneg %p105
      %p112 = scmp.eq.s32.totalorder %s18, 1
      %p113 = por %p111, %p112
      %p114 = scmp.ne.s32.totalorder %s106, %s109
      %p115 = scmp.eq.s32.totalorder %s18, 0
      %p116 = por %p114, %p115
      %p117 = scmp.ne.s32.totalorder %s106, %s109
      %p118 = scmp.eq.s32.totalorder %s23, 1
      %p119 = por %p117, %p118
      %p120 = scmp.ne.s32.totalorder %s109, %s110
      %p121 = scmp.eq.s32.totalorder %s23, 0
      %p122 = por %p120, %p121
      %p123 = scmp.ne.s32.totalorder %s109, %s110
      %p124 = scmp.eq.s32.totalorder %s24, 1
      %p125 = por %p123, %p124
      %p127 = scmp.ne.s32.totalorder %s110, %s126
      %p128 = scmp.eq.s32.totalorder %s24, 0
      %p129 = por %p127, %p128
      %p130 = scmp.le.s32.totalorder 1, %s18
      %p131 = scmp.lt.s32.totalorder %s18, 3
      %p132 = pnand %p130, %p131
      %p133 = pneg %p132
      // Predicated region
      $region9: #{tpu_custom_call.1} parent=5 // pred_check
        _
      $region10: #{tpu_custom_call.1} parent=5 // pred_check_branch
        %135 = sbr.rel (%p132) target = $region12
      $region11: #{tpu_custom_call.1} parent=5 // pred_region
        %s136 = ssub.s32 %s18, 1
      $region12: #{tpu_custom_call.1} parent=5 // pred_fallthru
        _
      %p137 = scmp.lt.s32.totalorder %s18, 2
      // Predicated region
      $region13: #{tpu_custom_call.1} parent=5 // pred_check
        %p138 = pneg %p137
      $region14: #{tpu_custom_call.1} parent=5 // pred_check_branch
        %140 = sbr.rel (%p138) target = $region16
      $region15: #{tpu_custom_call.1} parent=5 // pred_region
        // Predicated region
        $region17: #{tpu_custom_call.1} parent=15 // pred_check
          %p141 = pneg %p38
        $region18: #{tpu_custom_call.1} parent=15 // pred_check_branch
          %143 = sbr.rel (%p141) target = $region20
        $region19: #{tpu_custom_call.1} parent=15 // pred_region
          %s144 = sand.u32 %s28, 1
          %s145 = scalar_lea.sflag [#allocation4], %s144
          %s146 = sand.u32 %s28, 1
          %s147 = smul.addr %s146, 8
          %s148 = scalar_lea.vmem [#allocation3], %s147
          %s150 = ssub.s32 128, 128
          %151 = vsyncadd %s145, %s150
          %s152 = smul.addr %s18, 128
          %s153 = scalar_lea.hbm %s0, %s152
          %s155 = sshll.u32 %s148, 4
          %s156 = int_to_ptr.vmem [resolvable:$true] %s155
          %158 = dma.hbm_to_vmem [thread:$0]  %s153, 128, %s156, %s145
        $region20: #{tpu_custom_call.1} parent=15 // pred_fallthru
          _
        // Predicated region
        $region21: #{tpu_custom_call.1} parent=15 // pred_check
          %p159 = pneg %p64
        $region22: #{tpu_custom_call.1} parent=15 // pred_check_branch
          %161 = sbr.rel (%p159) target = $region24
        $region23: #{tpu_custom_call.1} parent=15 // pred_region
          %s162 = sand.u32 %s54, 1
          %s163 = scalar_lea.sflag [#allocation7], %s162
          %s164 = sand.u32 %s54, 1
          %s165 = smul.addr %s164, 8
          %s166 = scalar_lea.vmem [#allocation6], %s165
          %s168 = ssub.s32 128, 128
          %169 = vsyncadd %s163, %s168
          %s170 = smul.addr %s18, 128
          %s171 = scalar_lea.hbm %s1, %s170
          %s173 = sshll.u32 %s166, 4
          %s174 = int_to_ptr.vmem [resolvable:$true] %s173
          %176 = dma.hbm_to_vmem [thread:$0]  %s171, 128, %s174, %s163
        $region24: #{tpu_custom_call.1} parent=15 // pred_fallthru
          _
        // Predicated region
        $region25: #{tpu_custom_call.1} parent=15 // pred_check
          %p177 = pneg %p90
        $region26: #{tpu_custom_call.1} parent=15 // pred_check_branch
          %179 = sbr.rel (%p177) target = $region28
        $region27: #{tpu_custom_call.1} parent=15 // pred_region
          %p180 = scmp.lt.s32.totalorder %s18, 1
          %s181 = scalar_select %p180, %s18, 1
          %s182 = scalar_lea.vmem %s2, %s181
        $region28: #{tpu_custom_call.1} parent=15 // pred_fallthru
          _
      $region16: #{tpu_custom_call.1} parent=5 // pred_fallthru
        _
      %p183 = scmp.le.s32.totalorder 1, %s18
      %p184 = scmp.lt.s32.totalorder %s18, 3
      %p185 = pnand %p183, %p184
      %p186 = pneg %p185
      // Predicated region
      $region29: #{tpu_custom_call.1} parent=5 // pred_check
        _
      $region30: #{tpu_custom_call.1} parent=5 // pred_check_branch
        %188 = sbr.rel (%p185) target = $region32
      $region31: #{tpu_custom_call.1} parent=5 // pred_region
        %s189 = ssub.s32 %s18, 1
        %s190 = sand.u32 %s31, 1
        %s191 = scalar_lea.sflag [#allocation4], %s190
        %s192 = sand.u32 %s31, 1
        %s193 = smul.addr %s192, 8
        %s194 = scalar_lea.vmem [#allocation3], %s193
        // Predicated region
        $region33: #{tpu_custom_call.1} parent=31 // pred_check
          %p195 = pneg %p44
        $region34: #{tpu_custom_call.1} parent=31 // pred_check_branch
          %197 = sbr.rel (%p195) target = $region36
        $region35: #{tpu_custom_call.1} parent=31 // pred_region
          %198 = dma.done %s191, 128
        $region36: #{tpu_custom_call.1} parent=31 // pred_fallthru
          _
        %s199 = sand.u32 %s57, 1
        %s200 = scalar_lea.sflag [#allocation7], %s199
        %s201 = sand.u32 %s57, 1
        %s202 = smul.addr %s201, 8
        %s203 = scalar_lea.vmem [#allocation6], %s202
        // Predicated region
        $region37: #{tpu_custom_call.1} parent=31 // pred_check
          %p204 = pneg %p70
        $region38: #{tpu_custom_call.1} parent=31 // pred_check_branch
          %206 = sbr.rel (%p204) target = $region40
        $region39: #{tpu_custom_call.1} parent=31 // pred_region
          %207 = dma.done %s200, 128
        $region40: #{tpu_custom_call.1} parent=31 // pred_fallthru
          _
        %s208 = sand.u32 %s31, 1
        %s209 = scalar_lea.sflag [#allocation4], %s208
        %s210 = sand.u32 %s31, 1
        %s211 = smul.addr %s210, 8
        %s212 = scalar_lea.vmem [#allocation3], %s211
        %p213 = pneg %p44
        %p214 = pneg %p41
        %s215 = sand.u32 %s57, 1
        %s216 = scalar_lea.sflag [#allocation7], %s215
        %s217 = sand.u32 %s57, 1
        %s218 = smul.addr %s217, 8
        %s219 = scalar_lea.vmem [#allocation6], %s218
        %p220 = pneg %p70
        %p221 = pneg %p67
        %p222 = scmp.lt.s32.totalorder %s23, 1
        %s223 = scalar_select %p222, %s23, 1
        %s224 = scalar_lea.vmem %s2, %s223
        %p225 = pneg %p96
        %p226 = pneg %p93
        %p227 = pneg %p122
        %p228 = pneg %p119
        %s229 = sand.u32 %s109, 1
        %s230 = scalar_lea.sflag [#allocation5], %s229
        %s231 = sand.u32 %s109, 1
        %s232 = smul.addr %s231, 8
        %s233 = scalar_lea.vmem [#allocation8], %s232
        %p234 = scmp.lt.s32.totalorder %s23, 1
        %s235 = scalar_select %p234, %s23, 1
        %s236 = scalar_lea.vmem %s2, %s235
        %v237 = vld [vmem:[%s194] sm:$0xff]
        %v238 = vld [vmem:[%s203] sm:$0xff]
        %vm239 = vcmask 261120
        %v241 = vsel %vm239, %v237, 0
        %v244 = vsel %vm239, %v238, 0
        %246 = vmatprep.subr.mxu0 0.0
        %247 = vmatpush1.xpose.msra.mxu0 0.0
        %248 = vmatprep.subr.mxu0 0.0
        %249 = vmatpush1.xpose.msra.mxu0 0.0
        %250 = vmatprep.subr.mxu0 0.0
        %251 = vmatpush1.xpose.msra.mxu0 0.0
        %252 = vmatprep.subr.mxu0 0.0
        %253 = vmatpush1.xpose.msra.mxu0 0.0
        %254 = vmatprep.subr.mxu0 0.0
        %255 = vmatpush1.xpose.msra.mxu0 0.0
        %256 = vmatprep.subr.mxu0 0.0
        %257 = vmatpush1.xpose.msra.mxu0 0.0
        %258 = vmatprep.subr.mxu0 0.0
        %259 = vmatpush1.xpose.msra.mxu0 0.0
        %260 = vmatprep.subr.mxu0 0.0
        %261 = vmatpush1.xpose.msra.mxu0 0.0
        %262 = vmatprep.subr.mxu0 0.0
        %263 = vmatpush1.xpose.msra.mxu0 0.0
        %264 = vmatprep.subr.mxu0 0.0
        %265 = vmatpush1.xpose.msra.mxu0 0.0
        %266 = vmatprep.subr.mxu0 0.0
        %267 = vmatpush1.xpose.msra.mxu0 0.0
        %268 = vmatprep.subr.mxu0 0.0
        %269 = vmatpush1.xpose.msra.mxu0 0.0
        %270 = vmatprep.subr.mxu0 0.0
        %271 = vmatpush1.xpose.msra.mxu0 0.0
        %272 = vmatprep.subr.mxu0 0.0
        %273 = vmatpush1.xpose.msra.mxu0 0.0
        %274 = vmatprep.subr.mxu0 0.0
        %275 = vmatpush1.xpose.msra.mxu0 0.0
        %276 = vmatprep.subr.mxu0 0.0
        %277 = vmatpush1.xpose.msra.mxu0 %v244
        %278 = vmatprep.subr.mxu0 0.0
        %279 = vmatpush2.xpose.msra.mxu0 0.0
        %280 = vmatprep.subr.mxu0 0.0
        %281 = vmatpush2.xpose.msra.mxu0 0.0
        %282 = vmatprep.subr.mxu0 0.0
        %283 = vmatpush2.xpose.msra.mxu0 0.0
        %284 = vmatprep.subr.mxu0 0.0
        %285 = vmatpush2.xpose.msra.mxu0 0.0
        %286 = vmatprep.subr.mxu0 0.0
        %287 = vmatpush2.xpose.msra.mxu0 0.0
        %288 = vmatprep.subr.mxu0 0.0
        %289 = vmatpush2.xpose.msra.mxu0 0.0
        %290 = vmatprep.subr.mxu0 0.0
        %291 = vmatpush2.xpose.msra.mxu0 0.0
        %292 = vmatprep.subr.mxu0 0.0
        %293 = vmatpush2.xpose.msra.mxu0 0.0
        %294 = vmatprep.subr.mxu0 0.0
        %295 = vmatpush2.xpose.msra.mxu0 0.0
        %296 = vmatprep.subr.mxu0 0.0
        %297 = vmatpush2.xpose.msra.mxu0 0.0
        %298 = vmatprep.subr.mxu0 0.0
        %299 = vmatpush2.xpose.msra.mxu0 0.0
        %300 = vmatprep.subr.mxu0 0.0
        %301 = vmatpush2.xpose.msra.mxu0 0.0
        %302 = vmatprep.subr.mxu0 0.0
        %303 = vmatpush2.xpose.msra.mxu0 0.0
        %304 = vmatprep.subr.mxu0 0.0
        %305 = vmatpush2.xpose.msra.mxu0 0.0
        %306 = vmatprep.subr.mxu0 0.0
        %307 = vmatpush2.xpose.msra.mxu0 0.0
        %308 = vmatprep.subr.mxu0 0.0
        %309 = vmatpush2.xpose.msra.mxu0 0.0
        %310 = vmatprep.mubr.f32.mxu0 0.0
        %311 = vmatmul.mubr.f32.gmra.mxu0 %v241
        %v312 = vpop.f32.mrf.mxu0
        %v313 = vadd.f32 0.0, %v312
        %v314 = vpop.f32.mrf.mxu0
        %315 = vdwg.mxu0
        %v316 = vtanh.pop %v313
        %v317 = vmul.f32 %v316, 10.0
        %318 = vst [vmem:[#allocation2] sm:$0xff] -1e+08
        %vm319 = vcmask 64512
        %320 = vst.msk [vmem:[#allocation2] sm:$0xff] %vm319, %v317
        %v321 = vld [vmem:[#allocation2] sm:$0xff]
        %v322 = vld [vmem:[%s236] sm:$0x1]
        %v324 = vlaneseq
        %v325 = vshrl.u32 %v324, 7
        %v326 = vsub.s32 0, %v325
        %v327 = vrot.slane %v322, %v326
        %vm329 = vcmp.lt.f32.partialorder %v327, -1.0
        %v330 = vsel %vm329, -1e+08, %v321
        %331 = vmax.xlane.f32.xlu0 %v330
        %v332 = vpop.xlane.xlu0 %331
        %v333 = vsub.f32 %v330, %v332
        %v334 = vmul.f32 %v333, 1.442695
        %v335 = vpow.pop %v334
        %336 = vadd.xlane.f32.xlu0 %v335
        %v337 = vpop.xlane.xlu0 %336
        %v338 = vlog2.pop %v337
        %v339 = vmul.f32 %v338, 0.6931472
        %v340 = vsub.f32 %v333, %v339
        %341 = vst [vmem:[%s233] sm:$0xff] %v340
        %s342 = sand.u32 %s109, 1
        %s343 = scalar_lea.sflag [#allocation5], %s342
        %s344 = sand.u32 %s109, 1
        %s345 = smul.addr %s344, 8
        %s346 = scalar_lea.vmem [#allocation8], %s345
        // Predicated region
        $region41: #{tpu_custom_call.1} parent=31 // pred_check
          %p347 = pneg %p119
        $region42: #{tpu_custom_call.1} parent=31 // pred_check_branch
          %349 = sbr.rel (%p347) target = $region44
        $region43: #{tpu_custom_call.1} parent=31 // pred_region
          %s351 = ssub.s32 128, 128
          %352 = vsyncadd %s343, %s351
          %s353 = smul.addr %s23, 128
          %s354 = scalar_lea.hbm %s3, %s353
          %s356 = sshll.u32 %s346, 4
          %s357 = int_to_ptr.vmem [resolvable:$true] %s356
          %359 = dma.vmem_to_hbm [thread:$0]  %s357, 128, %s354, %s343
        $region44: #{tpu_custom_call.1} parent=31 // pred_fallthru
          _
      $region32: #{tpu_custom_call.1} parent=5 // pred_fallthru
        _
      %p360 = scmp.le.s32.totalorder 2, %s18
      // Predicated region
      $region45: #{tpu_custom_call.1} parent=5 // pred_check
        %p361 = pneg %p360
      $region46: #{tpu_custom_call.1} parent=5 // pred_check_branch
        %363 = sbr.rel (%p361) target = $region48
      $region47: #{tpu_custom_call.1} parent=5 // pred_region
        %s364 = ssub.s32 %s18, 2
        // Predicated region
        $region49: #{tpu_custom_call.1} parent=47 // pred_check
          %p365 = pneg %p125
        $region50: #{tpu_custom_call.1} parent=47 // pred_check_branch
          %367 = sbr.rel (%p365) target = $region52
        $region51: #{tpu_custom_call.1} parent=47 // pred_region
          %s368 = sand.u32 %s110, 1
          %s369 = scalar_lea.sflag [#allocation5], %s368
          %s370 = sand.u32 %s110, 1
          %s371 = smul.addr %s370, 8
          %s372 = scalar_lea.vmem [#allocation8], %s371
          %373 = dma.done %s369, 128
        $region52: #{tpu_custom_call.1} parent=47 // pred_fallthru
          _
      $region48: #{tpu_custom_call.1} parent=5 // pred_fallthru
        _
    $region6: #{tpu_custom_call.1} parent=1 // loop_footer
      %s22 = sadd.s32 1, %s18
    $region7: #{tpu_custom_call.1} parent=1 // loop_footer_branch
      %17 = sbr.rel target = $region3
    $region8: #{tpu_custom_call.1} parent=1 // loop_exit
      _
    %374 = vsyncpa [#allocation4], 1
    %s375 = scalar_lea.sflag [#allocation4], 1
    %376 = vsyncpa %s375, 1
    %377 = vsyncpa [#allocation7], 1
    %s378 = scalar_lea.sflag [#allocation7], 1
    %379 = vsyncpa %s378, 1
    %380 = vsyncpa [#allocation5], 1
    %s381 = scalar_lea.sflag [#allocation5], 1
    %382 = vsyncpa %s381, 1

</llo_original>
